<compile_context>
chip_gen: v7x
topology: tpu7x:2x2x1
jax: 0.10.0
libtpu: 0.0.40
codegen_flags: <defaults>
</compile_context>

<pallas_src>
from typing import NamedTuple

import numpy as np
import jax
import jax.numpy as jnp
from jax.experimental import pallas as pl
from jax.experimental.pallas import tpu as pltpu


# ----------------------------------------------------------------------------
# Kernel: one fused affine map,  o = x @ W + b,  f32 accumulation on the MXU.
# ----------------------------------------------------------------------------
def _affine_kernel(x_ref, w_ref, b_ref, o_ref):
    acc = jnp.dot(x_ref[...], w_ref[...], preferred_element_type=jnp.float32)
    o_ref[...] = (acc + b_ref[...]).astype(o_ref.dtype)


# ----------------------------------------------------------------------------
# One-time weight preprocessing.
# ----------------------------------------------------------------------------
class DecoderParams(NamedTuple):
    w: jax.Array         # [f_in, f_out] collapsed weight
    b: jax.Array         # [1, f_out]    collapsed bias (f32)
    w_packed: jax.Array  # [pack*f_in, pack*f_out] block-diagonal weight
    b_packed: jax.Array  # [1, pack*f_out]         tiled bias (f32)
    pack: int
    f_in: int
    f_out: int


def _round_up(a, m):
    return ((a + m - 1) // m) * m


def _choose_pack(f_in, f_out, itemsize, max_pack=8, max_packed_bytes=16 << 20):
    """Smallest power-of-2 row-pack factor making both feature dims lane-dense."""
    for p in (1, 2, 4, 8):
        if p > max_pack:
            break
        if (p * f_in) % 128 == 0 and (p * f_out) % 128 == 0:
            if (p * f_in) * (p * f_out) * itemsize <= max_packed_bytes:
                return p
            return 1
    return 1


def prepare_decoder_params(weights, biases, param_dtype=jnp.float32, pack=None):
    """Collapse the activation-free Linear stack into one affine map (once).

    weights: list of [out_i, in_i] arrays (PyTorch nn.Linear layout)
    biases:  list of [out_i] arrays
    Note: collapsing re-associates the FP math vs. the per-layer reference, and
    param_dtype=bfloat16 quantizes the already-collapsed W_eff; validate for
    production accuracy budgets.
    """
    w_eff = jnp.transpose(weights[0]).astype(jnp.float32)   # [in_0, out_0]
    b_eff = biases[0].astype(jnp.float32)                    # [out_0]
    for w, bb in zip(weights[1:], biases[1:]):
        w_t = jnp.transpose(w).astype(jnp.float32)            # [in_i, out_i]
        w_eff = w_eff @ w_t
        b_eff = b_eff @ w_t + bb.astype(jnp.float32)

    f_in, f_out = int(w_eff.shape[0]), int(w_eff.shape[1])
    itemsize = np.dtype(param_dtype).itemsize
    p = _choose_pack(f_in, f_out, itemsize) if pack is None else int(pack)

    w_eff = w_eff.astype(param_dtype)
    b_row = b_eff.reshape(1, -1)                              # bias stays f32

    if p > 1:
        eye = jnp.eye(p, dtype=w_eff.dtype)
        w_packed = jnp.kron(eye, w_eff)                       # block-diagonal
        b_packed = jnp.tile(b_row, (1, p))
    else:
        w_packed, b_packed = w_eff, b_row

    return DecoderParams(w_eff, b_row, w_packed, b_packed, p, f_in, f_out)


# ----------------------------------------------------------------------------
# Forward wrapper.
# ----------------------------------------------------------------------------
def _pick_tile(rows, cap_rows):
    """Batch-tile size in kernel rows: big tiles, but >=2 blocks for big jobs."""
    cap_rows = max(8, _round_up(cap_rows, 8))
    if rows <= 256:
        return rows                       # single block, no grid overhead
    half = _round_up((rows + 1) // 2, 8)  # >=2 blocks -> both v7x TCs busy
    return min(cap_rows, half)


def conv_decoder_forward(x, params: DecoderParams, *, block_m=8192, out_dtype=None):
    """Apply the collapsed decoder: out = x @ W_eff + b_eff.

    x: [batch, f_in].  block_m is the batch-tile cap in ORIGINAL rows.
    """
    batch, f_in = x.shape
    if f_in != params.f_in:
        raise ValueError(f"expected f_in={params.f_in}, got {f_in}")
    out_dtype = np.dtype(out_dtype) if out_dtype is not None else x.dtype

    # Lane-dense packed path when the batch divides the pack factor; otherwise
    # fall back to the plain row layout (ragged batches handled by the cdiv
    # grid below, never by jnp.pad / output slicing).
    p = params.pack if (params.pack > 1 and batch % params.pack == 0) else 1
    if p > 1:
        w, b = params.w_packed, params.b_packed
        xk = x.reshape(batch // p, p * f_in)          # free contiguous reshape
    else:
        w, b = params.w, params.b
        xk = x
    # Match activation dtype to the (possibly bf16) weights; fuses upstream.
    if xk.dtype != w.dtype:
        xk = xk.astype(w.dtype)

    rows, k = xk.shape
    n = w.shape[1]

    x_item = np.dtype(xk.dtype).itemsize
    o_item = out_dtype.itemsize
    w_item = np.dtype(w.dtype).itemsize

    def tile_bytes(t):  # double-buffered x/out tiles + (double-buffered) W, b
        return 2 * t * (k * x_item + n * o_item) + 2 * (k * n * w_item + n * 4)

    tm = _pick_tile(rows, max(8, block_m // p))
    while tm > 8 and tile_bytes(tm) > (48 << 20):     # keep under v7x VMEM
        tm = max(8, _round_up(tm // 2, 8))

    grid = (pl.cdiv(rows, tm),)
    vmem_limit = int(min(max(tile_bytes(tm) + (8 << 20), 32 << 20), 64 << 20))

    cost = pl.CostEstimate(
        flops=2 * rows * k * n,
        bytes_accessed=rows * k * x_item + rows * n * o_item + k * n * w_item + n * 4,
        transcendentals=0,
    )

    out = pl.pallas_call(
        _affine_kernel,
        out_shape=jax.ShapeDtypeStruct((rows, n), out_dtype),
        grid=grid,
        in_specs=[
            pl.BlockSpec((tm, k), lambda i: (i, 0)),    # activation tile
            pl.BlockSpec((k, n), lambda i: (0, 0)),     # weight, resident
            pl.BlockSpec((1, n), lambda i: (0, 0)),     # bias, resident
        ],
        out_specs=pl.BlockSpec((tm, n), lambda i: (i, 0)),
        compiler_params=pltpu.CompilerParams(
            dimension_semantics=("parallel",),
            vmem_limit_bytes=vmem_limit,
        ),
        cost_estimate=cost,
    )(xk, w, b)

    if p > 1:
        out = out.reshape(batch, params.f_out)          # free contiguous reshape
    return out


# ----------------------------------------------------------------------------
# Pure-JAX reference matching PyTorch semantics (layer by layer).
# ----------------------------------------------------------------------------
def _reference_forward(x, weights, biases):
    h = x
    for w, b in zip(weights, biases):
        h = h @ w.T + b
    return h


if __name__ == "__main__":
    # Layer config mirrors ConvDecoder(layers=[(32, 64), (64, 128), (128, 16)]).
    layer_params = [(32, 64), (64, 128), (128, 16)]

    key = jax.random.PRNGKey(0)
    keys = jax.random.split(key, 2 * len(layer_params) + 3)

    weights, biases = [], []
    for i, (fan_in, fan_out) in enumerate(layer_params):
        wk, bk = keys[2 * i], keys[2 * i + 1]
        bound = 1.0 / (fan_in ** 0.5)
        weights.append(jax.random.uniform(wk, (fan_out, fan_in), jnp.float32, -bound, bound))
        biases.append(jax.random.uniform(bk, (fan_out,), jnp.float32, -bound, bound))

    # One-time weight preprocessing (hoisted out of the forward path).
    params = prepare_decoder_params(weights, biases)                          # f32
    params_bf16 = prepare_decoder_params(weights, biases, param_dtype=jnp.bfloat16)

    # 1) Small batch: lane-dense packed path (pack=8), single block.
    x_small = jax.random.normal(keys[-3], (8, layer_params[0][0]), jnp.float32)
    out = jax.block_until_ready(conv_decoder_forward(x_small, params))
    ref = _reference_forward(x_small, weights, biases)
    assert out.shape == ref.shape, out.shape
    assert jnp.allclose(out, ref, atol=1e-4, rtol=1e-4), "mismatch (small batch)"

    # 2) Large batch (multiple of pack): packed + gridded, split over >=2 blocks.
    x_big = jax.random.normal(keys[-2], (8192, layer_params[0][0]), jnp.float32)
    out_big = jax.block_until_ready(conv_decoder_forward(x_big, params))
    ref_big = _reference_forward(x_big, weights, biases)
    assert out_big.shape == ref_big.shape, out_big.shape
    assert jnp.allclose(out_big, ref_big, atol=1e-4, rtol=1e-4), "mismatch (large batch)"

    # 3) Ragged batch (not a multiple of pack): plain layout, cdiv grid with
    #    masked out-of-bounds writes on the last block (no pad / slice copies).
    x_rag = jax.random.normal(keys[-1], (260, layer_params[0][0]), jnp.float32)
    out_rag = jax.block_until_ready(conv_decoder_forward(x_rag, params))
    ref_rag = _reference_forward(x_rag, weights, biases)
    assert out_rag.shape == ref_rag.shape, out_rag.shape
    assert jnp.allclose(out_rag, ref_rag, atol=1e-4, rtol=1e-4), "mismatch (ragged batch)"

    # 4) bf16 weights + activations + output (halved HBM bytes); f32 MXU acc.
    out_bf16 = jax.block_until_ready(
        conv_decoder_forward(x_big, params_bf16, out_dtype=jnp.bfloat16))
    assert out_bf16.dtype == jnp.bfloat16
    assert jnp.allclose(out_bf16.astype(jnp.float32), ref_big, atol=5e-2, rtol=5e-2), \
        "mismatch (bf16 path)"

    print("KERNEL_OK")
</pallas_src>

<mosaic_0001>
module attributes {stable_mosaic.version = 11 : i64} {
  func.func @_affine_kernel(%arg0: i32, %arg1: memref<1x256xf32, #tpu.memory_space<vmem>>, %arg2: memref<256x128xf32, #tpu.memory_space<vmem>>, %arg3: memref<1x128xf32, #tpu.memory_space<vmem>>, %arg4: memref<1x128xf32, #tpu.memory_space<vmem>>) attributes {dimension_semantics = [#tpu.dimension_semantics<parallel>], iteration_bounds = array<i64: 1>, scalar_prefetch = 0 : i64, scratch_operands = 0 : i64, tpu.core_type = #tpu.core_type<tc>, window_params = [{transform_indices = @transform_0, window_bounds = array<i64: 1, 256>}, {pipeline_mode = #tpu.pipeline_mode<synchronous>, transform_indices = @transform_1, window_bounds = array<i64: 256, 128>}, {pipeline_mode = #tpu.pipeline_mode<synchronous>, transform_indices = @transform_2, window_bounds = array<i64: 1, 128>}, {transform_indices = @transform_3, window_bounds = array<i64: 1, 128>}]} {
    %c0 = arith.constant 0 : index
    %c0_0 = arith.constant 0 : index
    %0 = vector.load %arg1[%c0, %c0_0] : memref<1x256xf32, #tpu.memory_space<vmem>>, vector<1x256xf32>
    %c0_1 = arith.constant 0 : index
    %c0_2 = arith.constant 0 : index
    %1 = vector.load %arg2[%c0_1, %c0_2] : memref<256x128xf32, #tpu.memory_space<vmem>>, vector<256x128xf32>
    %cst = arith.constant dense<0.000000e+00> : vector<1x128xf32>
    %2 = tpu.matmul %0, %1, %cst {dimension_numbers = #tpu.dot_dimension_numbers<[1], [0], [0], [1], [0, 0, 1, 1], [], []>} : vector<1x256xf32>, vector<256x128xf32>, vector<1x128xf32> -> vector<1x128xf32>
    %c0_3 = arith.constant 0 : index
    %c0_4 = arith.constant 0 : index
    %3 = vector.load %arg3[%c0_3, %c0_4] : memref<1x128xf32, #tpu.memory_space<vmem>>, vector<1x128xf32>
    %4 = arith.addf %2, %3 : vector<1x128xf32>
    %c0_5 = arith.constant 0 : index
    %c0_6 = arith.constant 0 : index
    %5 = vector.load %arg4[%c0_5, %c0_6] : memref<1x128xf32, #tpu.memory_space<vmem>>, vector<1x128xf32>
    tpu.vector_store %arg4[%c0_5, %c0_6], %4 {strides = array<i32>} : memref<1x128xf32, #tpu.memory_space<vmem>>, vector<1x128xf32>,
    return
  }
  func.func @transform_0(%arg0: i32) -> (i32, i32) {
    %c0_i32 = arith.constant 0 : i32
    %c0_i32_0 = arith.constant 0 : i32
    return %arg0, %c0_i32 : i32, i32
  }
  func.func @transform_1(%arg0: i32) -> (i32, i32) {
    %c0_i32 = arith.constant 0 : i32
    %c0_i32_0 = arith.constant 0 : i32
    %c0_i32_1 = arith.constant 0 : i32
    return %c0_i32, %c0_i32_0 : i32, i32
  }
  func.func @transform_2(%arg0: i32) -> (i32, i32) {
    %c0_i32 = arith.constant 0 : i32
    %c0_i32_0 = arith.constant 0 : i32
    %c0_i32_1 = arith.constant 0 : i32
    return %c0_i32, %c0_i32_0 : i32, i32
  }
  func.func @transform_3(%arg0: i32) -> (i32, i32) {
    %c0_i32 = arith.constant 0 : i32
    %c0_i32_0 = arith.constant 0 : i32
    return %arg0, %c0_i32 : i32, i32
  }
}

</mosaic_0001>

<llo_original>
// kernel: tpu_custom_call.1
$region0: #{tpu_custom_call.1}
  #allocation0 [shape = 'u32[]', space=smem, size = 0x4, offset = 0x4, fixed_abs, tag = 'smem constant byte address 0x4 - core index']
  #allocation1 [shape = 'u32[144,128]{1,0:T(1,128)}', space=vmem, size = 0x12000, scoped, tag = 'internal scratch']
  %s0 = inlined_call_operand.hbm [shape: f32[1,256], index: 0, kind: input, shape index: {}]
  %s1 = inlined_call_operand.hbm [shape: f32[256,128], index: 1, kind: input, shape index: {}]
  %s2 = inlined_call_operand.vmem [shape: f32[1,128], index: 2, kind: input, shape index: {}]
  %s3 = inlined_call_operand.hbm [shape: f32[1,128], index: 3, kind: output, shape index: {}]
  %s4 = sld [smem:[#allocation0]]
  $region30: #{tpu_custom_call.1} parent=0
    _
  %s6 = ssub.s32 1, %s4
  %s7 = scalar_select 0, %s6, %s4
  $region1: #{tpu_custom_call.1} parent=0
    #allocation2 [shape = 'u8[1024]{0}', space=vmem, size = 0x400, scoped, tag = 'input window, operand 0, single buffered']
    #allocation3 [shape = 's32[1]{0}', space=sflag, size = 0x4, scoped, tag = 'scoped memory for tpu_custom_call.1']
    #allocation4 [shape = 's32[1]{0}', space=sflag, size = 0x4, scoped, tag = 'scoped memory for tpu_custom_call.1']
    #allocation5 [shape = 'u8[131072]{0}', space=vmem, size = 0x20000, scoped, tag = 'input window, operand 1, single buffered']
    #allocation6 [shape = 's32[1]{0}', space=sflag, size = 0x4, scoped, tag = 'scoped memory for tpu_custom_call.1']
    #allocation7 [shape = 'u8[512]{0}', space=vmem, size = 0x400, scoped, tag = 'output window, operand 0, single buffered']
    %8 = vsyncpa [#allocation3], 0
    %9 = vsyncpa [#allocation6], 0
    %10 = vsyncpa [#allocation4], 0
    // Predicated region
    $region2: #{tpu_custom_call.1} parent=1 // pred_check
      _
    $region3: #{tpu_custom_call.1} parent=1 // pred_check_branch
      %12 = sbr.rel (0) target = $region5
    $region4: #{tpu_custom_call.1} parent=1 // pred_region
      %s14 = ssub.s32 32, 32
      %15 = vsyncadd [#allocation3], %s14
      %s17 = sshll.u32 [#allocation2], 4
      %s18 = int_to_ptr.vmem [resolvable:$true] %s17
      %20 = dma.hbm_to_vmem [thread:$0]  %s0, 32, %s18, [#allocation3]
    $region5: #{tpu_custom_call.1} parent=1 // pred_fallthru
      _
    // Predicated region
    $region6: #{tpu_custom_call.1} parent=1 // pred_check
      _
    $region7: #{tpu_custom_call.1} parent=1 // pred_check_branch
      %22 = sbr.rel (0) target = $region9
    $region8: #{tpu_custom_call.1} parent=1 // pred_region
      %s24 = ssub.s32 4096, 4096
      %25 = vsyncadd [#allocation6], %s24
      %s26 = sshll.u32 [#allocation5], 4
      %s27 = int_to_ptr.vmem [resolvable:$true] %s26
      %32 = dma.hbm_to_vmem [thread:$0]  %s1, 4096, %s27, [#allocation6], 128, 128, 8
    $region9: #{tpu_custom_call.1} parent=1 // pred_fallthru
      _
    // Predicated region
    $region10: #{tpu_custom_call.1} parent=1 // pred_check
      _
    $region11: #{tpu_custom_call.1} parent=1 // pred_check_branch
      %34 = sbr.rel (0) target = $region13
    $region12: #{tpu_custom_call.1} parent=1 // pred_region
      _
    $region13: #{tpu_custom_call.1} parent=1 // pred_fallthru
      _
    // Predicated region
    $region14: #{tpu_custom_call.1} parent=1 // pred_check
      _
    $region15: #{tpu_custom_call.1} parent=1 // pred_check_branch
      %36 = sbr.rel (0) target = $region17
    $region16: #{tpu_custom_call.1} parent=1 // pred_region
      %37 = dma.done [#allocation3], 32
    $region17: #{tpu_custom_call.1} parent=1 // pred_fallthru
      _
    // Predicated region
    $region18: #{tpu_custom_call.1} parent=1 // pred_check
      _
    $region19: #{tpu_custom_call.1} parent=1 // pred_check_branch
      %39 = sbr.rel (0) target = $region21
    $region20: #{tpu_custom_call.1} parent=1 // pred_region
      %40 = dma.done [#allocation6], 4096
    $region21: #{tpu_custom_call.1} parent=1 // pred_fallthru
      _
    %v41 = vld [vmem:[#allocation2] sm:$0x3]
    %v42 = vld [vmem:[#allocation5] sm:$0xff]
    %v43 = vld [vmem:[#allocation5 + $0x8] sm:$0xff]
    %v44 = vld [vmem:[#allocation5 + $0x10] sm:$0xff]
    %v45 = vld [vmem:[#allocation5 + $0x18] sm:$0xff]
    %v46 = vld [vmem:[#allocation5 + $0x20] sm:$0xff]
    %v47 = vld [vmem:[#allocation5 + $0x28] sm:$0xff]
    %v48 = vld [vmem:[#allocation5 + $0x30] sm:$0xff]
    %v49 = vld [vmem:[#allocation5 + $0x38] sm:$0xff]
    %v50 = vld [vmem:[#allocation5 + $0x40] sm:$0xff]
    %v51 = vld [vmem:[#allocation5 + $0x48] sm:$0xff]
    %v52 = vld [vmem:[#allocation5 + $0x50] sm:$0xff]
    %v53 = vld [vmem:[#allocation5 + $0x58] sm:$0xff]
    %v54 = vld [vmem:[#allocation5 + $0x60] sm:$0xff]
    %v55 = vld [vmem:[#allocation5 + $0x68] sm:$0xff]
    %v56 = vld [vmem:[#allocation5 + $0x70] sm:$0xff]
    %v57 = vld [vmem:[#allocation5 + $0x78] sm:$0xff]
    %v58 = vld [vmem:[#allocation5 + $0x80] sm:$0xff]
    %v59 = vld [vmem:[#allocation5 + $0x88] sm:$0xff]
    %v60 = vld [vmem:[#allocation5 + $0x90] sm:$0xff]
    %v61 = vld [vmem:[#allocation5 + $0x98] sm:$0xff]
    %v62 = vld [vmem:[#allocation5 + $0xa0] sm:$0xff]
    %v63 = vld [vmem:[#allocation5 + $0xa8] sm:$0xff]
    %v64 = vld [vmem:[#allocation5 + $0xb0] sm:$0xff]
    %v65 = vld [vmem:[#allocation5 + $0xb8] sm:$0xff]
    %v66 = vld [vmem:[#allocation5 + $0xc0] sm:$0xff]
    %v67 = vld [vmem:[#allocation5 + $0xc8] sm:$0xff]
    %v68 = vld [vmem:[#allocation5 + $0xd0] sm:$0xff]
    %v69 = vld [vmem:[#allocation5 + $0xd8] sm:$0xff]
    %v70 = vld [vmem:[#allocation5 + $0xe0] sm:$0xff]
    %v71 = vld [vmem:[#allocation5 + $0xe8] sm:$0xff]
    %v72 = vld [vmem:[#allocation5 + $0xf0] sm:$0xff]
    %v73 = vld [vmem:[#allocation5 + $0xf8] sm:$0xff]
    %v74 = vld [vmem:[%s2] sm:$0x1]
    %v76 = vlaneseq
    %v77 = vshrl.u32 %v76, 7
    %v78 = vsub.s32 0, %v77
    %v79 = vrot.slane %v41, %v78
    %v80 = vlaneseq
    %v81 = vshrl.u32 %v80, 7
    %v82 = vsub.s32 1, %v81
    %v83 = vrot.slane %v41, %v82
    %86 = vmatprep.subr.mxu0 0.0
    %87 = vmatpush1.msra.mxu0 %v42
    %88 = vmatprep.subr.mxu0 0.0
    %89 = vmatpush1.msra.mxu0 %v43
    %90 = vmatprep.subr.mxu0 0.0
    %91 = vmatpush1.msra.mxu0 %v44
    %92 = vmatprep.subr.mxu0 0.0
    %93 = vmatpush1.msra.mxu0 %v45
    %94 = vmatprep.subr.mxu0 0.0
    %95 = vmatpush1.msra.mxu0 %v46
    %96 = vmatprep.subr.mxu0 0.0
    %97 = vmatpush1.msra.mxu0 %v47
    %98 = vmatprep.subr.mxu0 0.0
    %99 = vmatpush1.msra.mxu0 %v48
    %100 = vmatprep.subr.mxu0 0.0
    %101 = vmatpush1.msra.mxu0 %v49
    %102 = vmatprep.subr.mxu0 0.0
    %103 = vmatpush1.msra.mxu0 %v50
    %104 = vmatprep.subr.mxu0 0.0
    %105 = vmatpush1.msra.mxu0 %v51
    %106 = vmatprep.subr.mxu0 0.0
    %107 = vmatpush1.msra.mxu0 %v52
    %108 = vmatprep.subr.mxu0 0.0
    %109 = vmatpush1.msra.mxu0 %v53
    %110 = vmatprep.subr.mxu0 0.0
    %111 = vmatpush1.msra.mxu0 %v54
    %112 = vmatprep.subr.mxu0 0.0
    %113 = vmatpush1.msra.mxu0 %v55
    %114 = vmatprep.subr.mxu0 0.0
    %115 = vmatpush1.msra.mxu0 %v56
    %116 = vmatprep.subr.mxu0 0.0
    %117 = vmatpush1.msra.mxu0 %v57
    %118 = vmatprep.subr.mxu0 0.0
    %119 = vmatpush1.msra.mxu0 %v58
    %120 = vmatprep.subr.mxu0 0.0
    %121 = vmatpush1.msra.mxu0 %v59
    %122 = vmatprep.subr.mxu0 0.0
    %123 = vmatpush1.msra.mxu0 %v60
    %124 = vmatprep.subr.mxu0 0.0
    %125 = vmatpush1.msra.mxu0 %v61
    %126 = vmatprep.subr.mxu0 0.0
    %127 = vmatpush1.msra.mxu0 %v62
    %128 = vmatprep.subr.mxu0 0.0
    %129 = vmatpush1.msra.mxu0 %v63
    %130 = vmatprep.subr.mxu0 0.0
    %131 = vmatpush1.msra.mxu0 %v64
    %132 = vmatprep.subr.mxu0 0.0
    %133 = vmatpush1.msra.mxu0 %v65
    %134 = vmatprep.subr.mxu0 0.0
    %135 = vmatpush1.msra.mxu0 %v66
    %136 = vmatprep.subr.mxu0 0.0
    %137 = vmatpush1.msra.mxu0 %v67
    %138 = vmatprep.subr.mxu0 0.0
    %139 = vmatpush1.msra.mxu0 %v68
    %140 = vmatprep.subr.mxu0 0.0
    %141 = vmatpush1.msra.mxu0 %v69
    %142 = vmatprep.subr.mxu0 0.0
    %143 = vmatpush1.msra.mxu0 %v70
    %144 = vmatprep.subr.mxu0 0.0
    %145 = vmatpush1.msra.mxu0 %v71
    %146 = vmatprep.subr.mxu0 0.0
    %147 = vmatpush1.msra.mxu0 %v72
    %148 = vmatprep.subr.mxu0 0.0
    %149 = vmatpush1.msra.mxu0 %v73
    %150 = vmatprep.mubr.f32.mxu0 %v83
    %151 = vmatmul.mubr.f32.gmra.mrb[0].mxu0 %v79
    %v152 = vpop.f32.mrb[0].mxu0
    %v153 = vadd.f32 %v74, %v152
    %v154 = vpop.f32.mrb[0].mxu0
    %155 = vdwg.mxu0
    %156 = vst [vmem:[#allocation7] sm:$0x1] %v153
    // Predicated region
    $region22: #{tpu_custom_call.1} parent=1 // pred_check
      _
    $region23: #{tpu_custom_call.1} parent=1 // pred_check_branch
      %158 = sbr.rel (0) target = $region25
    $region24: #{tpu_custom_call.1} parent=1 // pred_region
      %s160 = ssub.s32 16, 16
      %161 = vsyncadd [#allocation4], %s160
      %s163 = sshll.u32 [#allocation7], 4
      %s164 = int_to_ptr.vmem [resolvable:$true] %s163
      %166 = dma.vmem_to_hbm [thread:$0]  %s164, 16, %s3, [#allocation4]
    $region25: #{tpu_custom_call.1} parent=1 // pred_fallthru
      _
    // Predicated region
    $region26: #{tpu_custom_call.1} parent=1 // pred_check
      _
    $region27: #{tpu_custom_call.1} parent=1 // pred_check_branch
      %168 = sbr.rel (0) target = $region29
    $region28: #{tpu_custom_call.1} parent=1 // pred_region
      %169 = dma.done [#allocation4], 16
    $region29: #{tpu_custom_call.1} parent=1 // pred_fallthru
      _
    %170 = vsyncpa [#allocation3], 1
    %171 = vsyncpa [#allocation6], 1
    %172 = vsyncpa [#allocation4], 1

</llo_original>
